<compile_context>
chip_gen: v7x
topology: tpu7x:2x2x1
jax: 0.10.0
libtpu: 0.0.40
codegen_flags: <defaults>
</compile_context>

<pallas_src>
import functools
import math

import jax
import jax.numpy as jnp
from jax import lax
from jax.experimental import pallas as pl
from jax.experimental.pallas import tpu as pltpu


def _mhsa_kernel(x_ref, wqkv_ref, bqkv_ref, out_ref, attn_ref, *,
                 num_heads, head_dim, compute_dtype):
    # x_ref:    (1, N, D)      current batch's tokens
    # wqkv_ref: (D, 3D)        packed [Wq^T | Wk^T | Wv^T] (compute_dtype)
    # bqkv_ref: (1, 3D)        packed [bq | bk | bv] (f32)
    # out_ref:  (1, N, D)      lane-dense output block of (B, N, D)
    # attn_ref: (1, H, N, N)   attention probabilities
    D = num_heads * head_dim

    x = x_ref[0].astype(compute_dtype)          # (N, D) bf16 MXU operand
    w = wqkv_ref[...]                           # (D, 3D) already compute_dtype
    b = bqkv_ref[...]                           # (1, 3D) f32

    # Fused QKV projection: one lane-dense matmul, f32 accumulation.
    qkv = jnp.dot(x, w, preferred_element_type=jnp.float32) + b   # (N, 3D)

    # Fold 1/sqrt(Dh) into q (N*D multiply instead of N*N per head).
    inv_scale = jnp.float32(1.0 / math.sqrt(head_dim))
    q_all = (qkv[:, :D] * inv_scale).astype(compute_dtype)         # (N, D)
    k_all = qkv[:, D:2 * D].astype(compute_dtype)                  # (N, D)
    v_all = qkv[:, 2 * D:].astype(compute_dtype)                   # (N, D)

    for h in range(num_heads):                  # static unroll over heads
        s = h * head_dim
        q_h = q_all[:, s:s + head_dim]          # (N, Dh)
        k_h = k_all[:, s:s + head_dim]
        v_h = v_all[:, s:s + head_dim]

        # q @ k^T without an explicit transpose: contract the Dh axis of both.
        scores = lax.dot_general(
            q_h, k_h, (((1,), (1,)), ((), ())),
            preferred_element_type=jnp.float32)                    # (N, N) f32

        # Numerically stable softmax in f32; reciprocal on the EUP slot.
        m = jnp.max(scores, axis=-1, keepdims=True)
        p = jnp.exp(scores - m)
        denom = jnp.sum(p, axis=-1, keepdims=True)
        attn = p * pl.reciprocal(denom, approx=True)               # (N, N)

        # TODO(synk): nn.Dropout(drop_rate) is identity in eval mode; training-mode
        # stochastic dropout (pltpu.prng_*) is not applied here.

        out_h = jnp.dot(attn.astype(compute_dtype), v_h,
                        preferred_element_type=jnp.float32)        # (N, Dh)

        attn_ref[0, h] = attn.astype(attn_ref.dtype)
        out_ref[0, :, s:s + head_dim] = out_h.astype(out_ref.dtype)


def multiheaded_self_attention(x, params, num_heads, *,
                               compute_dtype=jnp.bfloat16):
    """x: (B, N, D). Returns (out (B, N, D), attention (B, H, N, N))."""
    B, N, D = x.shape
    H = num_heads
    Dh = D // H

    # PyTorch Linear weight is (out, in); y = x @ W^T + b.  Pack the three W^T
    # matrices side by side so the kernel does one (N, D) @ (D, 3D) matmul.
    # Head h of q/k/v is columns h*Dh:(h+1)*Dh of its D-wide segment, matching
    # torch's .view(B, N, H, Dh).
    wqkv = jnp.concatenate(
        [params["wq"].T, params["wk"].T, params["wv"].T], axis=1
    ).astype(compute_dtype)                                        # (D, 3D)
    bqkv = jnp.concatenate(
        [params["bq"], params["bk"], params["bv"]]
    ).reshape(1, 3 * D).astype(jnp.float32)                        # (1, 3D)

    kernel = functools.partial(
        _mhsa_kernel, num_heads=H, head_dim=Dh, compute_dtype=compute_dtype)

    out, attn = pl.pallas_call(
        kernel,
        out_shape=(
            jax.ShapeDtypeStruct((B, N, D), x.dtype),        # lane-dense output
            jax.ShapeDtypeStruct((B, H, N, N), jnp.float32), # attention probs
        ),
        grid_spec=pltpu.PrefetchScalarGridSpec(
            num_scalar_prefetch=0,
            grid=(B,),
            in_specs=[
                pl.BlockSpec((1, N, D), lambda b: (b, 0, 0)),
                # Weights/bias: same block every step -> stays resident in VMEM.
                pl.BlockSpec((D, 3 * D), lambda b: (0, 0)),
                pl.BlockSpec((1, 3 * D), lambda b: (0, 0)),
            ],
            out_specs=(
                pl.BlockSpec((1, N, D), lambda b: (b, 0, 0)),
                pl.BlockSpec((1, H, N, N), lambda b: (b, 0, 0, 0)),
            ),
        ),
        compiler_params=pltpu.CompilerParams(
            dimension_semantics=("parallel",)),
    )(x, wqkv, bqkv)

    return out, attn


def _reference(x, params, num_heads):
    """Pure-JAX f32 reference mirroring the PyTorch forward (eval mode)."""
    B, N, D = x.shape
    H = num_heads
    Dh = D // H
    q = x @ params["wq"].T + params["bq"]
    k = x @ params["wk"].T + params["bk"]
    v = x @ params["wv"].T + params["bv"]
    q = q.reshape(B, N, H, Dh).transpose(0, 2, 1, 3)
    k = k.reshape(B, N, H, Dh).transpose(0, 2, 3, 1)
    v = v.reshape(B, N, H, Dh).transpose(0, 2, 1, 3)
    attn = jax.nn.softmax(q @ k / jnp.sqrt(jnp.float32(Dh)), axis=-1)
    out = (attn @ v).transpose(0, 2, 1, 3).reshape(B, N, D)
    return out, attn


if __name__ == "__main__":
    B, N, D, H = 2, 8, 32, 4  # batch, seq, latent_vec_dim, num_heads
    key = jax.random.PRNGKey(0)
    kx, kwq, kbq, kwk, kbk, kwv, kbv = jax.random.split(key, 7)

    x = jax.random.normal(kx, (B, N, D), dtype=jnp.float32)
    params = {
        "wq": jax.random.normal(kwq, (D, D), dtype=jnp.float32) * 0.05,
        "bq": jax.random.normal(kbq, (D,), dtype=jnp.float32) * 0.01,
        "wk": jax.random.normal(kwk, (D, D), dtype=jnp.float32) * 0.05,
        "bk": jax.random.normal(kbk, (D,), dtype=jnp.float32) * 0.01,
        "wv": jax.random.normal(kwv, (D, D), dtype=jnp.float32) * 0.05,
        "bv": jax.random.normal(kbv, (D,), dtype=jnp.float32) * 0.01,
    }

    out, attn = multiheaded_self_attention(x, params, H)
    jax.block_until_ready((out, attn))

    ref_out, ref_attn = _reference(x, params, H)
    # bf16 MXU operands + EUP approx reciprocal -> relaxed tolerance vs. f32 ref.
    assert jnp.allclose(out, ref_out, atol=2e-2, rtol=2e-2)
    assert jnp.allclose(attn, ref_attn, atol=2e-2, rtol=2e-2)

    print("KERNEL_OK")
</pallas_src>

<mosaic_0001>
module attributes {stable_mosaic.version = 11 : i64} {
  func.func @_mhsa_kernel(%arg0: i32, %arg1: memref<1x8x32xf32, #tpu.memory_space<vmem>>, %arg2: memref<32x96xbf16, #tpu.memory_space<vmem>>, %arg3: memref<1x96xf32, #tpu.memory_space<vmem>>, %arg4: memref<1x8x32xf32, #tpu.memory_space<vmem>>, %arg5: memref<1x4x8x8xf32, #tpu.memory_space<vmem>>) attributes {dimension_semantics = [#tpu.dimension_semantics<parallel>], iteration_bounds = array<i64: 2>, scalar_prefetch = 0 : i64, scratch_operands = 0 : i64, tpu.core_type = #tpu.core_type<tc>, window_params = [{transform_indices = @transform_0, window_bounds = array<i64: 1, 8, 32>}, {pipeline_mode = #tpu.pipeline_mode<synchronous>, transform_indices = @transform_1, window_bounds = array<i64: 32, 96>}, {pipeline_mode = #tpu.pipeline_mode<synchronous>, transform_indices = @transform_2, window_bounds = array<i64: 1, 96>}, {transform_indices = @transform_3, window_bounds = array<i64: 1, 8, 32>}, {transform_indices = @transform_4, window_bounds = array<i64: 1, 4, 8, 8>}]} {
    %c0 = arith.constant 0 : index
    %c0_0 = arith.constant 0 : index
    %c0_1 = arith.constant 0 : index
    %0 = vector.load %arg1[%c0, %c0_0, %c0_1] : memref<1x8x32xf32, #tpu.memory_space<vmem>>, vector<1x8x32xf32>
    %1 = vector.shape_cast %0 : vector<1x8x32xf32> to vector<8x32xf32>
    %2 = arith.truncf %1 : vector<8x32xf32> to vector<8x32xbf16>
    %c0_2 = arith.constant 0 : index
    %c0_3 = arith.constant 0 : index
    %3 = vector.load %arg2[%c0_2, %c0_3] : memref<32x96xbf16, #tpu.memory_space<vmem>>, vector<32x96xbf16>
    %c0_4 = arith.constant 0 : index
    %c0_5 = arith.constant 0 : index
    %4 = vector.load %arg3[%c0_4, %c0_5] : memref<1x96xf32, #tpu.memory_space<vmem>>, vector<1x96xf32>
    %cst = arith.constant dense<0.000000e+00> : vector<8x96xf32>
    %5 = tpu.matmul %2, %3, %cst {dimension_numbers = #tpu.dot_dimension_numbers<[1], [0], [0], [1], [0, 0, 1, 1], [], []>} : vector<8x32xbf16>, vector<32x96xbf16>, vector<8x96xf32> -> vector<8x96xf32>
    %6 = vector.broadcast %4 : vector<1x96xf32> to vector<8x96xf32>
    %7 = arith.addf %5, %6 : vector<8x96xf32>
    %8 = vector.extract_strided_slice %7 {offsets = [0, 0], sizes = [8, 32], strides = [1, 1]} : vector<8x96xf32> to vector<8x32xf32>
    %cst_6 = arith.constant 0.353553385 : f32
    %9 = vector.broadcast %cst_6 : f32 to vector<8x32xf32>
    %10 = arith.mulf %8, %9 : vector<8x32xf32>
    %11 = arith.truncf %10 : vector<8x32xf32> to vector<8x32xbf16>
    %12 = vector.extract_strided_slice %7 {offsets = [0, 32], sizes = [8, 32], strides = [1, 1]} : vector<8x96xf32> to vector<8x32xf32>
    %13 = arith.truncf %12 : vector<8x32xf32> to vector<8x32xbf16>
    %14 = vector.extract_strided_slice %7 {offsets = [0, 64], sizes = [8, 32], strides = [1, 1]} : vector<8x96xf32> to vector<8x32xf32>
    %15 = arith.truncf %14 : vector<8x32xf32> to vector<8x32xbf16>
    %16 = vector.extract_strided_slice %11 {offsets = [0, 0], sizes = [8, 8], strides = [1, 1]} : vector<8x32xbf16> to vector<8x8xbf16>
    %17 = vector.extract_strided_slice %13 {offsets = [0, 0], sizes = [8, 8], strides = [1, 1]} : vector<8x32xbf16> to vector<8x8xbf16>
    %18 = vector.extract_strided_slice %15 {offsets = [0, 0], sizes = [8, 8], strides = [1, 1]} : vector<8x32xbf16> to vector<8x8xbf16>
    %cst_7 = arith.constant dense<0.000000e+00> : vector<8x8xf32>
    %19 = tpu.matmul %16, %17, %cst_7 {dimension_numbers = #tpu.dot_dimension_numbers<[1], [1], [0], [0], [0, 0, 1, 0], [], []>} : vector<8x8xbf16>, vector<8x8xbf16>, vector<8x8xf32> -> vector<8x8xf32>
    %cst_8 = arith.constant dense<0xFF800000> : vector<8xf32>
    %20 = vector.multi_reduction <maximumf>, %19, %cst_8 [1] : vector<8x8xf32> to vector<8xf32>
    %21 = vector.shape_cast %20 : vector<8xf32> to vector<8x1xf32>
    %22 = vector.broadcast %21 : vector<8x1xf32> to vector<8x8xf32>
    %23 = arith.subf %19, %22 : vector<8x8xf32>
    %24 = math.exp %23 : vector<8x8xf32>
    %cst_9 = arith.constant dense<0.000000e+00> : vector<8xf32>
    %25 = vector.multi_reduction <add>, %24, %cst_9 [1] : vector<8x8xf32> to vector<8xf32>
    %26 = vector.shape_cast %25 : vector<8xf32> to vector<8x1xf32>
    %27 = tpu.reciprocal %26 {approx = true} : vector<8x1xf32> -> vector<8x1xf32>
    %28 = vector.broadcast %27 : vector<8x1xf32> to vector<8x8xf32>
    %29 = arith.mulf %24, %28 : vector<8x8xf32>
    %30 = arith.truncf %29 : vector<8x8xf32> to vector<8x8xbf16>
    %cst_10 = arith.constant dense<0.000000e+00> : vector<8x8xf32>
    %31 = tpu.matmul %30, %18, %cst_10 {dimension_numbers = #tpu.dot_dimension_numbers<[1], [0], [0], [1], [0, 0, 1, 1], [], []>} : vector<8x8xbf16>, vector<8x8xbf16>, vector<8x8xf32> -> vector<8x8xf32>
    %c0_11 = arith.constant 0 : index
    %c0_12 = arith.constant 0 : index
    %c0_13 = arith.constant 0 : index
    %c0_14 = arith.constant 0 : index
    %32 = vector.load %arg5[%c0_11, %c0_12, %c0_13, %c0_14] : memref<1x4x8x8xf32, #tpu.memory_space<vmem>>, vector<1x1x8x8xf32>
    %33 = vector.shape_cast %32 : vector<1x1x8x8xf32> to vector<8x8xf32>
    %34 = vector.shape_cast %29 : vector<8x8xf32> to vector<1x1x8x8xf32>
    tpu.vector_store %arg5[%c0_11, %c0_12, %c0_13, %c0_14], %34 {strides = array<i32>} : memref<1x4x8x8xf32, #tpu.memory_space<vmem>>, vector<1x1x8x8xf32>,
    %c0_15 = arith.constant 0 : index
    %c0_16 = arith.constant 0 : index
    %c0_17 = arith.constant 0 : index
    %35 = vector.load %arg4[%c0_15, %c0_16, %c0_17] : memref<1x8x32xf32, #tpu.memory_space<vmem>>, vector<1x8x8xf32>
    %36 = vector.shape_cast %35 : vector<1x8x8xf32> to vector<8x8xf32>
    %37 = vector.shape_cast %31 : vector<8x8xf32> to vector<1x8x8xf32>
    tpu.vector_store %arg4[%c0_15, %c0_16, %c0_17], %37 {strides = array<i32>} : memref<1x8x32xf32, #tpu.memory_space<vmem>>, vector<1x8x8xf32>,
    %38 = vector.extract_strided_slice %11 {offsets = [0, 8], sizes = [8, 8], strides = [1, 1]} : vector<8x32xbf16> to vector<8x8xbf16>
    %39 = vector.extract_strided_slice %13 {offsets = [0, 8], sizes = [8, 8], strides = [1, 1]} : vector<8x32xbf16> to vector<8x8xbf16>
    %40 = vector.extract_strided_slice %15 {offsets = [0, 8], sizes = [8, 8], strides = [1, 1]} : vector<8x32xbf16> to vector<8x8xbf16>
    %cst_18 = arith.constant dense<0.000000e+00> : vector<8x8xf32>
    %41 = tpu.matmul %38, %39, %cst_18 {dimension_numbers = #tpu.dot_dimension_numbers<[1], [1], [0], [0], [0, 0, 1, 0], [], []>} : vector<8x8xbf16>, vector<8x8xbf16>, vector<8x8xf32> -> vector<8x8xf32>
    %cst_19 = arith.constant dense<0xFF800000> : vector<8xf32>
    %42 = vector.multi_reduction <maximumf>, %41, %cst_19 [1] : vector<8x8xf32> to vector<8xf32>
    %43 = vector.shape_cast %42 : vector<8xf32> to vector<8x1xf32>
    %44 = vector.broadcast %43 : vector<8x1xf32> to vector<8x8xf32>
    %45 = arith.subf %41, %44 : vector<8x8xf32>
    %46 = math.exp %45 : vector<8x8xf32>
    %cst_20 = arith.constant dense<0.000000e+00> : vector<8xf32>
    %47 = vector.multi_reduction <add>, %46, %cst_20 [1] : vector<8x8xf32> to vector<8xf32>
    %48 = vector.shape_cast %47 : vector<8xf32> to vector<8x1xf32>
    %49 = tpu.reciprocal %48 {approx = true} : vector<8x1xf32> -> vector<8x1xf32>
    %50 = vector.broadcast %49 : vector<8x1xf32> to vector<8x8xf32>
    %51 = arith.mulf %46, %50 : vector<8x8xf32>
    %52 = arith.truncf %51 : vector<8x8xf32> to vector<8x8xbf16>
    %cst_21 = arith.constant dense<0.000000e+00> : vector<8x8xf32>
    %53 = tpu.matmul %52, %40, %cst_21 {dimension_numbers = #tpu.dot_dimension_numbers<[1], [0], [0], [1], [0, 0, 1, 1], [], []>} : vector<8x8xbf16>, vector<8x8xbf16>, vector<8x8xf32> -> vector<8x8xf32>
    %c0_22 = arith.constant 0 : index
    %c1 = arith.constant 1 : index
    %c0_23 = arith.constant 0 : index
    %c0_24 = arith.constant 0 : index
    %54 = vector.load %arg5[%c0_22, %c1, %c0_23, %c0_24] : memref<1x4x8x8xf32, #tpu.memory_space<vmem>>, vector<1x1x8x8xf32>
    %55 = vector.shape_cast %54 : vector<1x1x8x8xf32> to vector<8x8xf32>
    %56 = vector.shape_cast %51 : vector<8x8xf32> to vector<1x1x8x8xf32>
    tpu.vector_store %arg5[%c0_22, %c1, %c0_23, %c0_24], %56 {strides = array<i32>} : memref<1x4x8x8xf32, #tpu.memory_space<vmem>>, vector<1x1x8x8xf32>,
    %c0_25 = arith.constant 0 : index
    %c0_26 = arith.constant 0 : index
    %c8 = arith.constant 8 : index
    %57 = vector.load %arg4[%c0_25, %c0_26, %c8] : memref<1x8x32xf32, #tpu.memory_space<vmem>>, vector<1x8x8xf32>
    %58 = vector.shape_cast %57 : vector<1x8x8xf32> to vector<8x8xf32>
    %59 = vector.shape_cast %53 : vector<8x8xf32> to vector<1x8x8xf32>
    tpu.vector_store %arg4[%c0_25, %c0_26, %c8], %59 {strides = array<i32>} : memref<1x8x32xf32, #tpu.memory_space<vmem>>, vector<1x8x8xf32>,
    %60 = vector.extract_strided_slice %11 {offsets = [0, 16], sizes = [8, 8], strides = [1, 1]} : vector<8x32xbf16> to vector<8x8xbf16>
    %61 = vector.extract_strided_slice %13 {offsets = [0, 16], sizes = [8, 8], strides = [1, 1]} : vector<8x32xbf16> to vector<8x8xbf16>
    %62 = vector.extract_strided_slice %15 {offsets = [0, 16], sizes = [8, 8], strides = [1, 1]} : vector<8x32xbf16> to vector<8x8xbf16>
    %cst_27 = arith.constant dense<0.000000e+00> : vector<8x8xf32>
    %63 = tpu.matmul %60, %61, %cst_27 {dimension_numbers = #tpu.dot_dimension_numbers<[1], [1], [0], [0], [0, 0, 1, 0], [], []>} : vector<8x8xbf16>, vector<8x8xbf16>, vector<8x8xf32> -> vector<8x8xf32>
    %cst_28 = arith.constant dense<0xFF800000> : vector<8xf32>
    %64 = vector.multi_reduction <maximumf>, %63, %cst_28 [1] : vector<8x8xf32> to vector<8xf32>
    %65 = vector.shape_cast %64 : vector<8xf32> to vector<8x1xf32>
    %66 = vector.broadcast %65 : vector<8x1xf32> to vector<8x8xf32>
    %67 = arith.subf %63, %66 : vector<8x8xf32>
    %68 = math.exp %67 : vector<8x8xf32>
    %cst_29 = arith.constant dense<0.000000e+00> : vector<8xf32>
    %69 = vector.multi_reduction <add>, %68, %cst_29 [1] : vector<8x8xf32> to vector<8xf32>
    %70 = vector.shape_cast %69 : vector<8xf32> to vector<8x1xf32>
    %71 = tpu.reciprocal %70 {approx = true} : vector<8x1xf32> -> vector<8x1xf32>
    %72 = vector.broadcast %71 : vector<8x1xf32> to vector<8x8xf32>
    %73 = arith.mulf %68, %72 : vector<8x8xf32>
    %74 = arith.truncf %73 : vector<8x8xf32> to vector<8x8xbf16>
    %cst_30 = arith.constant dense<0.000000e+00> : vector<8x8xf32>
    %75 = tpu.matmul %74, %62, %cst_30 {dimension_numbers = #tpu.dot_dimension_numbers<[1], [0], [0], [1], [0, 0, 1, 1], [], []>} : vector<8x8xbf16>, vector<8x8xbf16>, vector<8x8xf32> -> vector<8x8xf32>
    %c0_31 = arith.constant 0 : index
    %c2 = arith.constant 2 : index
    %c0_32 = arith.constant 0 : index
    %c0_33 = arith.constant 0 : index
    %76 = vector.load %arg5[%c0_31, %c2, %c0_32, %c0_33] : memref<1x4x8x8xf32, #tpu.memory_space<vmem>>, vector<1x1x8x8xf32>
    %77 = vector.shape_cast %76 : vector<1x1x8x8xf32> to vector<8x8xf32>
    %78 = vector.shape_cast %73 : vector<8x8xf32> to vector<1x1x8x8xf32>
    tpu.vector_store %arg5[%c0_31, %c2, %c0_32, %c0_33], %78 {strides = array<i32>} : memref<1x4x8x8xf32, #tpu.memory_space<vmem>>, vector<1x1x8x8xf32>,
    %c0_34 = arith.constant 0 : index
    %c0_35 = arith.constant 0 : index
    %c16 = arith.constant 16 : index
    %79 = vector.load %arg4[%c0_34, %c0_35, %c16] : memref<1x8x32xf32, #tpu.memory_space<vmem>>, vector<1x8x8xf32>
    %80 = vector.shape_cast %79 : vector<1x8x8xf32> to vector<8x8xf32>
    %81 = vector.shape_cast %75 : vector<8x8xf32> to vector<1x8x8xf32>
    tpu.vector_store %arg4[%c0_34, %c0_35, %c16], %81 {strides = array<i32>} : memref<1x8x32xf32, #tpu.memory_space<vmem>>, vector<1x8x8xf32>,
    %82 = vector.extract_strided_slice %11 {offsets = [0, 24], sizes = [8, 8], strides = [1, 1]} : vector<8x32xbf16> to vector<8x8xbf16>
    %83 = vector.extract_strided_slice %13 {offsets = [0, 24], sizes = [8, 8], strides = [1, 1]} : vector<8x32xbf16> to vector<8x8xbf16>
    %84 = vector.extract_strided_slice %15 {offsets = [0, 24], sizes = [8, 8], strides = [1, 1]} : vector<8x32xbf16> to vector<8x8xbf16>
    %cst_36 = arith.constant dense<0.000000e+00> : vector<8x8xf32>
    %85 = tpu.matmul %82, %83, %cst_36 {dimension_numbers = #tpu.dot_dimension_numbers<[1], [1], [0], [0], [0, 0, 1, 0], [], []>} : vector<8x8xbf16>, vector<8x8xbf16>, vector<8x8xf32> -> vector<8x8xf32>
    %cst_37 = arith.constant dense<0xFF800000> : vector<8xf32>
    %86 = vector.multi_reduction <maximumf>, %85, %cst_37 [1] : vector<8x8xf32> to vector<8xf32>
    %87 = vector.shape_cast %86 : vector<8xf32> to vector<8x1xf32>
    %88 = vector.broadcast %87 : vector<8x1xf32> to vector<8x8xf32>
    %89 = arith.subf %85, %88 : vector<8x8xf32>
    %90 = math.exp %89 : vector<8x8xf32>
    %cst_38 = arith.constant dense<0.000000e+00> : vector<8xf32>
    %91 = vector.multi_reduction <add>, %90, %cst_38 [1] : vector<8x8xf32> to vector<8xf32>
    %92 = vector.shape_cast %91 : vector<8xf32> to vector<8x1xf32>
    %93 = tpu.reciprocal %92 {approx = true} : vector<8x1xf32> -> vector<8x1xf32>
    %94 = vector.broadcast %93 : vector<8x1xf32> to vector<8x8xf32>
    %95 = arith.mulf %90, %94 : vector<8x8xf32>
    %96 = arith.truncf %95 : vector<8x8xf32> to vector<8x8xbf16>
    %cst_39 = arith.constant dense<0.000000e+00> : vector<8x8xf32>
    %97 = tpu.matmul %96, %84, %cst_39 {dimension_numbers = #tpu.dot_dimension_numbers<[1], [0], [0], [1], [0, 0, 1, 1], [], []>} : vector<8x8xbf16>, vector<8x8xbf16>, vector<8x8xf32> -> vector<8x8xf32>
    %c0_40 = arith.constant 0 : index
    %c3 = arith.constant 3 : index
    %c0_41 = arith.constant 0 : index
    %c0_42 = arith.constant 0 : index
    %98 = vector.load %arg5[%c0_40, %c3, %c0_41, %c0_42] : memref<1x4x8x8xf32, #tpu.memory_space<vmem>>, vector<1x1x8x8xf32>
    %99 = vector.shape_cast %98 : vector<1x1x8x8xf32> to vector<8x8xf32>
    %100 = vector.shape_cast %95 : vector<8x8xf32> to vector<1x1x8x8xf32>
    tpu.vector_store %arg5[%c0_40, %c3, %c0_41, %c0_42], %100 {strides = array<i32>} : memref<1x4x8x8xf32, #tpu.memory_space<vmem>>, vector<1x1x8x8xf32>,
    %c0_43 = arith.constant 0 : index
    %c0_44 = arith.constant 0 : index
    %c24 = arith.constant 24 : index
    %101 = vector.load %arg4[%c0_43, %c0_44, %c24] : memref<1x8x32xf32, #tpu.memory_space<vmem>>, vector<1x8x8xf32>
    %102 = vector.shape_cast %101 : vector<1x8x8xf32> to vector<8x8xf32>
    %103 = vector.shape_cast %97 : vector<8x8xf32> to vector<1x8x8xf32>
    tpu.vector_store %arg4[%c0_43, %c0_44, %c24], %103 {strides = array<i32>} : memref<1x8x32xf32, #tpu.memory_space<vmem>>, vector<1x8x8xf32>,
    return
  }
  func.func @transform_0(%arg0: i32) -> (i32, i32, i32) {
    %c0_i32 = arith.constant 0 : i32
    %c0_i32_0 = arith.constant 0 : i32
    %c0_i32_1 = arith.constant 0 : i32
    return %arg0, %c0_i32, %c0_i32_0 : i32, i32, i32
  }
  func.func @transform_1(%arg0: i32) -> (i32, i32) {
    %c0_i32 = arith.constant 0 : i32
    %c0_i32_0 = arith.constant 0 : i32
    %c0_i32_1 = arith.constant 0 : i32
    return %c0_i32, %c0_i32_0 : i32, i32
  }
  func.func @transform_2(%arg0: i32) -> (i32, i32) {
    %c0_i32 = arith.constant 0 : i32
    %c0_i32_0 = arith.constant 0 : i32
    %c0_i32_1 = arith.constant 0 : i32
    return %c0_i32, %c0_i32_0 : i32, i32
  }
  func.func @transform_3(%arg0: i32) -> (i32, i32, i32) {
    %c0_i32 = arith.constant 0 : i32
    %c0_i32_0 = arith.constant 0 : i32
    %c0_i32_1 = arith.constant 0 : i32
    return %arg0, %c0_i32, %c0_i32_0 : i32, i32, i32
  }
  func.func @transform_4(%arg0: i32) -> (i32, i32, i32, i32) {
    %c0_i32 = arith.constant 0 : i32
    %c0_i32_0 = arith.constant 0 : i32
    %c0_i32_1 = arith.constant 0 : i32
    %c0_i32_2 = arith.constant 0 : i32
    return %arg0, %c0_i32, %c0_i32_0, %c0_i32_1 : i32, i32, i32, i32
  }
}

</mosaic_0001>

<llo_original>
// kernel: tpu_custom_call.1
$region0: #{tpu_custom_call.1}
  #allocation0 [shape = 'u32[]', space=smem, size = 0x4, offset = 0x4, fixed_abs, tag = 'smem constant byte address 0x4 - core index']
  #allocation1 [shape = 'u32[144,128]{1,0:T(1,128)}', space=vmem, size = 0x12000, scoped, tag = 'internal scratch']
  %s0 = inlined_call_operand.hbm [shape: f32[2,8,32], index: 0, kind: input, shape index: {}]
  %s1 = inlined_call_operand.hbm [shape: bf16[32,96], index: 1, kind: input, shape index: {}]
  %s2 = inlined_call_operand.vmem [shape: f32[1,96], index: 2, kind: input, shape index: {}]
  %s3 = inlined_call_operand.hbm [shape: f32[2,8,32], index: 3, kind: output, shape index: {0}]
  %s4 = inlined_call_operand.hbm [shape: f32[2,4,8,8], index: 4, kind: output, shape index: {1}]
  %5 = xla_tuple %s3, %s4
  %s6 = sld [smem:[#allocation0]]
  $region61: #{tpu_custom_call.1} parent=0
    _
  %s8 = ssub.s32 1, %s6
  %s9 = scalar_select 0, %s8, %s6
  $region1: #{tpu_custom_call.1} parent=0
    #allocation2 [shape = 'u8[8192]{0}', space=vmem, size = 0x2000, scoped, tag = 'input window, operand 0']
    #allocation3 [shape = 's32[2]{0}', space=sflag, size = 0x8, scoped, tag = 'scoped memory for tpu_custom_call.1']
    #allocation4 [shape = 's32[2]{0}', space=sflag, size = 0x8, scoped, tag = 'scoped memory for tpu_custom_call.1']
    #allocation5 [shape = 'u8[8192]{0}', space=vmem, size = 0x2000, scoped, tag = 'input window, operand 1, single buffered']
    #allocation6 [shape = 's32[1]{0}', space=sflag, size = 0x4, scoped, tag = 'scoped memory for tpu_custom_call.1']
    #allocation7 [shape = 'u8[8192]{0}', space=vmem, size = 0x2000, scoped, tag = 'output window, operand 0']
    #allocation8 [shape = 'u8[32768]{0}', space=vmem, size = 0x8000, scoped, tag = 'output window, operand 1']
    #allocation9 [shape = 's32[2]{0}', space=sflag, size = 0x8, scoped, tag = 'scoped memory for tpu_custom_call.1']
    %10 = vsyncpa [#allocation3], 0
    %s11 = scalar_lea.sflag [#allocation3], 1
    %12 = vsyncpa %s11, 0
    %13 = vsyncpa [#allocation6], 0
    %14 = vsyncpa [#allocation4], 0
    %s15 = scalar_lea.sflag [#allocation4], 1
    %16 = vsyncpa %s15, 0
    %17 = vsyncpa [#allocation9], 0
    %s18 = scalar_lea.sflag [#allocation9], 1
    %19 = vsyncpa %s18, 0
    loop: start=0, step=1, limit=4
    $region2: #{tpu_custom_call.1} parent=1 // loop_pre_header
      _
    $region3: #{tpu_custom_call.1} parent=1 // loop_header
      %s21 = sphi 0, %s25
      %p22 = scmp.ge.s32.totalorder %s21, 4
      %s31 = sphi 0, %s33
      %s34 = sphi 0, %s31
      %s35 = sphi 0, %s34
      %s51 = sphi 0, %s35
      %s55 = sphi 0, %s55
      %s57 = sphi 0, %s55
      %s58 = sphi 0, %s57
      %s72 = sphi 0, %s58
      %s76 = sphi 0, %s76
      %s78 = sphi 0, %s76
      %s79 = sphi 0, %s78
      %s93 = sphi 0, %s79
      %s99 = sphi 0, %s101
      %s102 = sphi 0, %s99
      %s103 = sphi 0, %s102
      %s119 = sphi 0, %s103
      %s125 = sphi 0, %s127
      %s128 = sphi 0, %s125
      %s129 = sphi 0, %s128
      %s145 = sphi 0, %s129
    $region4: #{tpu_custom_call.1} parent=1 // loop_header_branch
      %24 = sbr.rel (%p22) target = $region8
    $region5: #{tpu_custom_call.1} parent=1 // loop_body
      %s26 = ssub.s32 %s21, 1
      %s27 = ssub.s32 %s21, 2
      %s28 = sadd.s32 %s21, 1
      %s29 = ssub.s32 %s21, %s28
      %p30 = scmp.eq.s32.totalorder %s29, 0
      %s32 = sadd.s32 %s31, 1
      %s33 = scalar_select %p30, %s31, %s32
      %p36 = pneg %p30
      %p37 = scmp.eq.s32.totalorder %s21, 1
      %p38 = por %p36, %p37
      %p39 = scmp.ne.s32.totalorder %s31, %s34
      %p40 = scmp.eq.s32.totalorder %s21, 0
      %p41 = por %p39, %p40
      %p42 = scmp.ne.s32.totalorder %s31, %s34
      %p43 = scmp.eq.s32.totalorder %s26, 1
      %p44 = por %p42, %p43
      %p45 = scmp.ne.s32.totalorder %s34, %s35
      %p46 = scmp.eq.s32.totalorder %s26, 0
      %p47 = por %p45, %p46
      %p48 = scmp.ne.s32.totalorder %s34, %s35
      %p49 = scmp.eq.s32.totalorder %s27, 1
      %p50 = por %p48, %p49
      %p52 = scmp.ne.s32.totalorder %s35, %s51
      %p53 = scmp.eq.s32.totalorder %s27, 0
      %p54 = por %p52, %p53
      %s56 = sadd.s32 %s55, 1
      %p59 = scmp.eq.s32.totalorder %s21, 1
      %p60 = scmp.ne.s32.totalorder %s55, %s57
      %p61 = scmp.eq.s32.totalorder %s21, 0
      %p62 = por %p60, %p61
      %p63 = scmp.ne.s32.totalorder %s55, %s57
      %p64 = scmp.eq.s32.totalorder %s26, 1
      %p65 = por %p63, %p64
      %p66 = scmp.ne.s32.totalorder %s57, %s58
      %p67 = scmp.eq.s32.totalorder %s26, 0
      %p68 = por %p66, %p67
      %p69 = scmp.ne.s32.totalorder %s57, %s58
      %p70 = scmp.eq.s32.totalorder %s27, 1
      %p71 = por %p69, %p70
      %p73 = scmp.ne.s32.totalorder %s58, %s72
      %p74 = scmp.eq.s32.totalorder %s27, 0
      %p75 = por %p73, %p74
      %s77 = sadd.s32 %s76, 1
      %p80 = scmp.eq.s32.totalorder %s21, 1
      %p81 = scmp.ne.s32.totalorder %s76, %s78
      %p82 = scmp.eq.s32.totalorder %s21, 0
      %p83 = por %p81, %p82
      %p84 = scmp.ne.s32.totalorder %s76, %s78
      %p85 = scmp.eq.s32.totalorder %s26, 1
      %p86 = por %p84, %p85
      %p87 = scmp.ne.s32.totalorder %s78, %s79
      %p88 = scmp.eq.s32.totalorder %s26, 0
      %p89 = por %p87, %p88
      %p90 = scmp.ne.s32.totalorder %s78, %s79
      %p91 = scmp.eq.s32.totalorder %s27, 1
      %p92 = por %p90, %p91
      %p94 = scmp.ne.s32.totalorder %s79, %s93
      %p95 = scmp.eq.s32.totalorder %s27, 0
      %p96 = por %p94, %p95
      %s97 = ssub.s32 %s21, %s28
      %p98 = scmp.eq.s32.totalorder %s97, 0
      %s100 = sadd.s32 %s99, 1
      %s101 = scalar_select %p98, %s99, %s100
      %p104 = pneg %p98
      %p105 = scmp.eq.s32.totalorder %s21, 1
      %p106 = por %p104, %p105
      %p107 = scmp.ne.s32.totalorder %s99, %s102
      %p108 = scmp.eq.s32.totalorder %s21, 0
      %p109 = por %p107, %p108
      %p110 = scmp.ne.s32.totalorder %s99, %s102
      %p111 = scmp.eq.s32.totalorder %s26, 1
      %p112 = por %p110, %p111
      %p113 = scmp.ne.s32.totalorder %s102, %s103
      %p114 = scmp.eq.s32.totalorder %s26, 0
      %p115 = por %p113, %p114
      %p116 = scmp.ne.s32.totalorder %s102, %s103
      %p117 = scmp.eq.s32.totalorder %s27, 1
      %p118 = por %p116, %p117
      %p120 = scmp.ne.s32.totalorder %s103, %s119
      %p121 = scmp.eq.s32.totalorder %s27, 0
      %p122 = por %p120, %p121
      %s123 = ssub.s32 %s21, %s28
      %p124 = scmp.eq.s32.totalorder %s123, 0
      %s126 = sadd.s32 %s125, 1
      %s127 = scalar_select %p124, %s125, %s126
      %p130 = pneg %p124
      %p131 = scmp.eq.s32.totalorder %s21, 1
      %p132 = por %p130, %p131
      %p133 = scmp.ne.s32.totalorder %s125, %s128
      %p134 = scmp.eq.s32.totalorder %s21, 0
      %p135 = por %p133, %p134
      %p136 = scmp.ne.s32.totalorder %s125, %s128
      %p137 = scmp.eq.s32.totalorder %s26, 1
      %p138 = por %p136, %p137
      %p139 = scmp.ne.s32.totalorder %s128, %s129
      %p140 = scmp.eq.s32.totalorder %s26, 0
      %p141 = por %p139, %p140
      %p142 = scmp.ne.s32.totalorder %s128, %s129
      %p143 = scmp.eq.s32.totalorder %s27, 1
      %p144 = por %p142, %p143
      %p146 = scmp.ne.s32.totalorder %s129, %s145
      %p147 = scmp.eq.s32.totalorder %s27, 0
      %p148 = por %p146, %p147
      %p149 = scmp.le.s32.totalorder 1, %s21
      %p150 = scmp.lt.s32.totalorder %s21, 3
      %p151 = pnand %p149, %p150
      %p152 = pneg %p151
      // Predicated region
      $region9: #{tpu_custom_call.1} parent=5 // pred_check
        _
      $region10: #{tpu_custom_call.1} parent=5 // pred_check_branch
        %154 = sbr.rel (%p151) target = $region12
      $region11: #{tpu_custom_call.1} parent=5 // pred_region
        %s155 = ssub.s32 %s21, 1
        // Predicated region
        $region13: #{tpu_custom_call.1} parent=11 // pred_check
          %p156 = pneg %p68
        $region14: #{tpu_custom_call.1} parent=11 // pred_check_branch
          %158 = sbr.rel (%p156) target = $region16
        $region15: #{tpu_custom_call.1} parent=11 // pred_region
          %s160 = ssub.s32 256, 256
          %161 = vsyncadd [#allocation6], %s160
          %s162 = sshll.u32 [#allocation5], 4
          %s163 = int_to_ptr.vmem [resolvable:$true] %s162
          %168 = dma.hbm_to_vmem [thread:$0]  %s1, 256, %s163, [#allocation6], 64, 64, 4
        $region16: #{tpu_custom_call.1} parent=11 // pred_fallthru
          _
        // Predicated region
        $region17: #{tpu_custom_call.1} parent=11 // pred_check
          %p169 = pneg %p89
        $region18: #{tpu_custom_call.1} parent=11 // pred_check_branch
          %171 = sbr.rel (%p169) target = $region20
        $region19: #{tpu_custom_call.1} parent=11 // pred_region
          _
        $region20: #{tpu_custom_call.1} parent=11 // pred_fallthru
          _
      $region12: #{tpu_custom_call.1} parent=5 // pred_fallthru
        _
      %p172 = scmp.lt.s32.totalorder %s21, 2
      // Predicated region
      $region21: #{tpu_custom_call.1} parent=5 // pred_check
        %p173 = pneg %p172
      $region22: #{tpu_custom_call.1} parent=5 // pred_check_branch
        %175 = sbr.rel (%p173) target = $region24
      $region23: #{tpu_custom_call.1} parent=5 // pred_region
        // Predicated region
        $region25: #{tpu_custom_call.1} parent=23 // pred_check
          %p176 = pneg %p41
        $region26: #{tpu_custom_call.1} parent=23 // pred_check_branch
          %178 = sbr.rel (%p176) target = $region28
        $region27: #{tpu_custom_call.1} parent=23 // pred_region
          %s179 = sand.u32 %s31, 1
          %s180 = scalar_lea.sflag [#allocation3], %s179
          %s181 = sand.u32 %s31, 1
          %s182 = smul.addr %s181, 8
          %s183 = scalar_lea.vmem [#allocation2], %s182
          %s185 = ssub.s32 128, 128
          %186 = vsyncadd %s180, %s185
          %s187 = smul.addr %s21, 128
          %s188 = scalar_lea.hbm %s0, %s187
          %s190 = sshll.u32 %s183, 4
          %s191 = int_to_ptr.vmem [resolvable:$true] %s190
          %193 = dma.hbm_to_vmem [thread:$0]  %s188, 128, %s191, %s180
        $region28: #{tpu_custom_call.1} parent=23 // pred_fallthru
          _
      $region24: #{tpu_custom_call.1} parent=5 // pred_fallthru
        _
      %p194 = scmp.le.s32.totalorder 1, %s21
      %p195 = scmp.lt.s32.totalorder %s21, 3
      %p196 = pnand %p194, %p195
      %p197 = pneg %p196
      // Predicated region
      $region29: #{tpu_custom_call.1} parent=5 // pred_check
        _
      $region30: #{tpu_custom_call.1} parent=5 // pred_check_branch
        %199 = sbr.rel (%p196) target = $region32
      $region31: #{tpu_custom_call.1} parent=5 // pred_region
        %s200 = ssub.s32 %s21, 1
        %s201 = sand.u32 %s34, 1
        %s202 = scalar_lea.sflag [#allocation3], %s201
        %s203 = sand.u32 %s34, 1
        %s204 = smul.addr %s203, 8
        %s205 = scalar_lea.vmem [#allocation2], %s204
        // Predicated region
        $region33: #{tpu_custom_call.1} parent=31 // pred_check
          %p206 = pneg %p47
        $region34: #{tpu_custom_call.1} parent=31 // pred_check_branch
          %208 = sbr.rel (%p206) target = $region36
        $region35: #{tpu_custom_call.1} parent=31 // pred_region
          %209 = dma.done %s202, 128
        $region36: #{tpu_custom_call.1} parent=31 // pred_fallthru
          _
        // Predicated region
        $region37: #{tpu_custom_call.1} parent=31 // pred_check
          %p210 = pneg %p68
        $region38: #{tpu_custom_call.1} parent=31 // pred_check_branch
          %212 = sbr.rel (%p210) target = $region40
        $region39: #{tpu_custom_call.1} parent=31 // pred_region
          %213 = dma.done [#allocation6], 256
        $region40: #{tpu_custom_call.1} parent=31 // pred_fallthru
          _
        %s214 = sand.u32 %s34, 1
        %s215 = scalar_lea.sflag [#allocation3], %s214
        %s216 = sand.u32 %s34, 1
        %s217 = smul.addr %s216, 8
        %s218 = scalar_lea.vmem [#allocation2], %s217
        %p219 = pneg %p47
        %p220 = pneg %p44
        %p221 = pneg %p68
        %p222 = pneg %p65
        %p223 = pneg %p89
        %p224 = pneg %p86
        %p225 = pneg %p115
        %p226 = pneg %p112
        %s227 = sand.u32 %s102, 1
        %s228 = scalar_lea.sflag [#allocation4], %s227
        %s229 = sand.u32 %s102, 1
        %s230 = smul.addr %s229, 8
        %s231 = scalar_lea.vmem [#allocation7], %s230
        %p232 = pneg %p141
        %p233 = pneg %p138
        %s234 = sand.u32 %s128, 1
        %s235 = scalar_lea.sflag [#allocation9], %s234
        %s236 = sand.u32 %s128, 1
        %s237 = smul.addr %s236, 32
        %s238 = scalar_lea.vmem [#allocation8], %s237
        %v240 = vld [vmem:[%s205] sm:$0xff]
        %v241 = vpack.c.bf16 %v240, %v240
        %v242 = vld [vmem:[#allocation5] sm:$0xf]
        %v243 = vld [vmem:[#allocation5 + $0x4] sm:$0xf]
        %v244 = vld [vmem:[#allocation5 + $0x8] sm:$0xf]
        %v245 = vld [vmem:[#allocation5 + $0xc] sm:$0xf]
        %v246 = vld [vmem:[%s2] sm:$0x1]
        %v248 = vlaneseq
        %v249 = vshrl.u32 %v248, 7
        %v250 = vsub.s32 0, %v249
        %v251 = vrot.slane %v246, %v250
        %v257 = vunpack.c.l.b16 %v242
        %v258 = vunpack.c.l.b16 %v243
        %v259 = vunpack.c.l.b16 %v244
        %v260 = vunpack.c.l.b16 %v245
        %v261 = vpack.c.b16 %v258, %v257
        %v262 = vpack.c.b16 %v260, %v259
        %vm265 = vcmask 261120
        %v267 = vsel %vm265, %v241, 0
        %269 = vmatprep.subr.bf16.mxu0 0
        %270 = vmatpush1.bf16.msra.mxu0 %v261
        %271 = vmatprep.subr.bf16.mxu0 0
        %272 = vmatpush1.bf16.msra.mxu0 %v262
        %273 = vmatprep.subr.bf16.mxu0 0
        %274 = vmatpush1.bf16.msra.mxu0 0
        %275 = vmatprep.subr.bf16.mxu0 0
        %276 = vmatpush1.bf16.msra.mxu0 0
        %277 = vmatprep.subr.bf16.mxu0 0
        %278 = vmatpush1.bf16.msra.mxu0 0
        %279 = vmatprep.subr.bf16.mxu0 0
        %280 = vmatpush1.bf16.msra.mxu0 0
        %281 = vmatprep.subr.bf16.mxu0 0
        %282 = vmatpush1.bf16.msra.mxu0 0
        %283 = vmatprep.subr.bf16.mxu0 0
        %284 = vmatpush1.bf16.msra.mxu0 0
        %285 = vmatprep.subr.bf16.mxu0 0
        %286 = vmatpush1.bf16.msra.mxu0 0
        %287 = vmatprep.subr.bf16.mxu0 0
        %288 = vmatpush1.bf16.msra.mxu0 0
        %289 = vmatprep.subr.bf16.mxu0 0
        %290 = vmatpush1.bf16.msra.mxu0 0
        %291 = vmatprep.subr.bf16.mxu0 0
        %292 = vmatpush1.bf16.msra.mxu0 0
        %293 = vmatprep.subr.bf16.mxu0 0
        %294 = vmatpush1.bf16.msra.mxu0 0
        %295 = vmatprep.subr.bf16.mxu0 0
        %296 = vmatpush1.bf16.msra.mxu0 0
        %297 = vmatprep.subr.bf16.mxu0 0
        %298 = vmatpush1.bf16.msra.mxu0 0
        %299 = vmatprep.subr.bf16.mxu0 0
        %300 = vmatpush1.bf16.msra.mxu0 0
        %301 = vmatprep.mubr.bf16.mxu0 0
        %302 = vmatmul.mubr.bf16.gmra.mrb[0].mxu0 %v267
        %v303 = vpop.f32.mrb[0].mxu0
        %v304 = vadd.f32 %v251, %v303
        %v305 = vpop.f32.mrb[0].mxu0
        %v306 = vpop.f32.mrb[0].mxu0
        %v307 = vpop.f32.mrb[0].mxu0
        %308 = vdwg.mxu0
        %v309 = vmul.f32 %v304, 0.35355338
        %v310 = vpack.c.bf16 %v309, %v309
        %v311 = vpack.c.bf16 %v304, %v304
        %313 = vrot.lane.b32.xlu0 %v311, 96
        %v314 = vpop.permute.xlu0 %313
        %vm315 = vcmask 64512
        %v317 = vsel %vm315, %v310, 0
        %v320 = vsel %vm315, %v314, 0
        %322 = vmatprep.subr.bf16.mxu0 0
        %323 = vmatpush1.bf16.xpose.msra.mxu0 %v320
        %324 = vmatprep.subr.bf16.mxu0 0
        %325 = vmatpush1.bf16.xpose.msra.mxu0 0
        %326 = vmatprep.subr.bf16.mxu0 0
        %327 = vmatpush1.bf16.xpose.msra.mxu0 0
        %328 = vmatprep.subr.bf16.mxu0 0
        %329 = vmatpush1.bf16.xpose.msra.mxu0 0
        %330 = vmatprep.subr.bf16.mxu0 0
        %331 = vmatpush1.bf16.xpose.msra.mxu0 0
        %332 = vmatprep.subr.bf16.mxu0 0
        %333 = vmatpush1.bf16.xpose.msra.mxu0 0
        %334 = vmatprep.subr.bf16.mxu0 0
        %335 = vmatpush1.bf16.xpose.msra.mxu0 0
        %336 = vmatprep.subr.bf16.mxu0 0
        %337 = vmatpush1.bf16.xpose.msra.mxu0 0
        %338 = vmatprep.subr.bf16.mxu0 0
        %339 = vmatpush1.bf16.xpose.msra.mxu0 0
        %340 = vmatprep.subr.bf16.mxu0 0
        %341 = vmatpush1.bf16.xpose.msra.mxu0 0
        %342 = vmatprep.subr.bf16.mxu0 0
        %343 = vmatpush1.bf16.xpose.msra.mxu0 0
        %344 = vmatprep.subr.bf16.mxu0 0
        %345 = vmatpush1.bf16.xpose.msra.mxu0 0
        %346 = vmatprep.subr.bf16.mxu0 0
        %347 = vmatpush1.bf16.xpose.msra.mxu0 0
        %348 = vmatprep.subr.bf16.mxu0 0
        %349 = vmatpush1.bf16.xpose.msra.mxu0 0
        %350 = vmatprep.subr.bf16.mxu0 0
        %351 = vmatpush1.bf16.xpose.msra.mxu0 0
        %352 = vmatprep.subr.bf16.mxu0 0
        %353 = vmatpush1.bf16.xpose.msra.mxu0 0
        %354 = vmatprep.mubr.bf16.mxu0 0
        %355 = vmatmul.mubr.bf16.gmra.mrb[0].mxu0 %v317
        %v356 = vpop.f32.mrb[0].mxu0
        %v357 = vadd.f32 0.0, %v356
        %v358 = vpop.f32.mrb[0].mxu0
        %v359 = vpop.f32.mrb[0].mxu0
        %v360 = vpop.f32.mrb[0].mxu0
        %361 = vdwg.mxu0
        %v362 = vsel %vm315, %v357, -inf
        %363 = vmax.xlane.f32.xlu0 %v362
        %v364 = vpop.xlane.xlu0 %363
        %v365 = vsub.f32 %v357, %v364
        %v366 = vmul.f32 %v365, 1.442695
        %v367 = vpow.pop %v366
        %v368 = vsel %vm315, %v367, 0.0
        %369 = vadd.xlane.f32.xlu0 %v368
        %v370 = vpop.xlane.xlu0 %369
        %v371 = vrcp.pop %v370
        %v372 = vmul.f32 %v367, %v371
        %v373 = vpack.c.bf16 %v372, %v372
        %374 = vrot.lane.b32.xlu0 %v311, 64
        %v375 = vpop.permute.xlu0 %374
        %v377 = vsel %vm315, %v373, 0
        %vm379 = vcmask 1043456
        %v381 = vsel %vm379, %v375, 0
        %383 = vmatprep.subr.bf16.mxu0 0
        %384 = vmatpush1.bf16.msra.mxu0 %v381
        %385 = vmatprep.subr.bf16.mxu0 0
        %386 = vmatpush1.bf16.msra.mxu0 0
        %387 = vmatprep.subr.bf16.mxu0 0
        %388 = vmatpush1.bf16.msra.mxu0 0
        %389 = vmatprep.subr.bf16.mxu0 0
        %390 = vmatpush1.bf16.msra.mxu0 0
        %391 = vmatprep.subr.bf16.mxu0 0
        %392 = vmatpush1.bf16.msra.mxu0 0
        %393 = vmatprep.subr.bf16.mxu0 0
        %394 = vmatpush1.bf16.msra.mxu0 0
        %395 = vmatprep.subr.bf16.mxu0 0
        %396 = vmatpush1.bf16.msra.mxu0 0
        %397 = vmatprep.subr.bf16.mxu0 0
        %398 = vmatpush1.bf16.msra.mxu0 0
        %399 = vmatprep.subr.bf16.mxu0 0
        %400 = vmatpush1.bf16.msra.mxu0 0
        %401 = vmatprep.subr.bf16.mxu0 0
        %402 = vmatpush1.bf16.msra.mxu0 0
        %403 = vmatprep.subr.bf16.mxu0 0
        %404 = vmatpush1.bf16.msra.mxu0 0
        %405 = vmatprep.subr.bf16.mxu0 0
        %406 = vmatpush1.bf16.msra.mxu0 0
        %407 = vmatprep.subr.bf16.mxu0 0
        %408 = vmatpush1.bf16.msra.mxu0 0
        %409 = vmatprep.subr.bf16.mxu0 0
        %410 = vmatpush1.bf16.msra.mxu0 0
        %411 = vmatprep.subr.bf16.mxu0 0
        %412 = vmatpush1.bf16.msra.mxu0 0
        %413 = vmatprep.subr.bf16.mxu0 0
        %414 = vmatpush1.bf16.msra.mxu0 0
        %415 = vmatprep.mubr.bf16.mxu0 0
        %416 = vmatmul.mubr.bf16.gmra.mrb[0].mxu0 %v377
        %v417 = vpop.f32.mrb[0].mxu0
        %v418 = vadd.f32 0.0, %v417
        %v419 = vpop.f32.mrb[0].mxu0
        %v420 = vpop.f32.mrb[0].mxu0
        %v421 = vpop.f32.mrb[0].mxu0
        %422 = vdwg.mxu0
        %423 = vst.msk [vmem:[%s238] sm:$0xff] %vm315, %v372
        %424 = vst.msk [vmem:[%s231] sm:$0xff] %vm315, %v418
        %426 = vrot.lane.b32.xlu0 %v310, 120
        %v427 = vpop.permute.xlu0 %426
        %428 = vrot.lane.b32.xlu0 %v311, 88
        %v429 = vpop.permute.xlu0 %428
        %v431 = vsel %vm315, %v427, 0
        %v434 = vsel %vm315, %v429, 0
        %436 = vmatprep.subr.bf16.mxu0 0
        %437 = vmatpush1.bf16.xpose.msra.mxu0 %v434
        %438 = vmatprep.subr.bf16.mxu0 0
        %439 = vmatpush1.bf16.xpose.msra.mxu0 0
        %440 = vmatprep.subr.bf16.mxu0 0
        %441 = vmatpush1.bf16.xpose.msra.mxu0 0
        %442 = vmatprep.subr.bf16.mxu0 0
        %443 = vmatpush1.bf16.xpose.msra.mxu0 0
        %444 = vmatprep.subr.bf16.mxu0 0
        %445 = vmatpush1.bf16.xpose.msra.mxu0 0
        %446 = vmatprep.subr.bf16.mxu0 0
        %447 = vmatpush1.bf16.xpose.msra.mxu0 0
        %448 = vmatprep.subr.bf16.mxu0 0
        %449 = vmatpush1.bf16.xpose.msra.mxu0 0
        %450 = vmatprep.subr.bf16.mxu0 0
        %451 = vmatpush1.bf16.xpose.msra.mxu0 0
        %452 = vmatprep.subr.bf16.mxu0 0
        %453 = vmatpush1.bf16.xpose.msra.mxu0 0
        %454 = vmatprep.subr.bf16.mxu0 0
        %455 = vmatpush1.bf16.xpose.msra.mxu0 0
        %456 = vmatprep.subr.bf16.mxu0 0
        %457 = vmatpush1.bf16.xpose.msra.mxu0 0
        %458 = vmatprep.subr.bf16.mxu0 0
        %459 = vmatpush1.bf16.xpose.msra.mxu0 0
        %460 = vmatprep.subr.bf16.mxu0 0
        %461 = vmatpush1.bf16.xpose.msra.mxu0 0
        %462 = vmatprep.subr.bf16.mxu0 0
        %463 = vmatpush1.bf16.xpose.msra.mxu0 0
        %464 = vmatprep.subr.bf16.mxu0 0
        %465 = vmatpush1.bf16.xpose.msra.mxu0 0
        %466 = vmatprep.subr.bf16.mxu0 0
        %467 = vmatpush1.bf16.xpose.msra.mxu0 0
        %468 = vmatprep.mubr.bf16.mxu0 0
        %469 = vmatmul.mubr.bf16.gmra.mrb[0].mxu0 %v431
        %v470 = vpop.f32.mrb[0].mxu0
        %v471 = vadd.f32 0.0, %v470
        %v472 = vpop.f32.mrb[0].mxu0
        %v473 = vpop.f32.mrb[0].mxu0
        %v474 = vpop.f32.mrb[0].mxu0
        %475 = vdwg.mxu0
        %v476 = vsel %vm315, %v471, -inf
        %477 = vmax.xlane.f32.xlu0 %v476
        %v478 = vpop.xlane.xlu0 %477
        %v479 = vsub.f32 %v471, %v478
        %v480 = vmul.f32 %v479, 1.442695
        %v481 = vpow.pop %v480
        %v482 = vsel %vm315, %v481, 0.0
        %483 = vadd.xlane.f32.xlu0 %v482
        %v484 = vpop.xlane.xlu0 %483
        %v485 = vrcp.pop %v484
        %v486 = vmul.f32 %v481, %v485
        %v487 = vpack.c.bf16 %v486, %v486
        %488 = vrot.lane.b32.xlu0 %v311, 56
        %v489 = vpop.permute.xlu0 %488
        %v491 = vsel %vm315, %v487, 0
        %v494 = vsel %vm379, %v489, 0
        %496 = vmatprep.subr.bf16.mxu0 0
        %497 = vmatpush1.bf16.msra.mxu0 %v494
        %498 = vmatprep.subr.bf16.mxu0 0
        %499 = vmatpush1.bf16.msra.mxu0 0
        %500 = vmatprep.subr.bf16.mxu0 0
        %501 = vmatpush1.bf16.msra.mxu0 0
        %502 = vmatprep.subr.bf16.mxu0 0
        %503 = vmatpush1.bf16.msra.mxu0 0
        %504 = vmatprep.subr.bf16.mxu0 0
        %505 = vmatpush1.bf16.msra.mxu0 0
        %506 = vmatprep.subr.bf16.mxu0 0
        %507 = vmatpush1.bf16.msra.mxu0 0
        %508 = vmatprep.subr.bf16.mxu0 0
        %509 = vmatpush1.bf16.msra.mxu0 0
        %510 = vmatprep.subr.bf16.mxu0 0
        %511 = vmatpush1.bf16.msra.mxu0 0
        %512 = vmatprep.subr.bf16.mxu0 0
        %513 = vmatpush1.bf16.msra.mxu0 0
        %514 = vmatprep.subr.bf16.mxu0 0
        %515 = vmatpush1.bf16.msra.mxu0 0
        %516 = vmatprep.subr.bf16.mxu0 0
        %517 = vmatpush1.bf16.msra.mxu0 0
        %518 = vmatprep.subr.bf16.mxu0 0
        %519 = vmatpush1.bf16.msra.mxu0 0
        %520 = vmatprep.subr.bf16.mxu0 0
        %521 = vmatpush1.bf16.msra.mxu0 0
        %522 = vmatprep.subr.bf16.mxu0 0
        %523 = vmatpush1.bf16.msra.mxu0 0
        %524 = vmatprep.subr.bf16.mxu0 0
        %525 = vmatpush1.bf16.msra.mxu0 0
        %526 = vmatprep.subr.bf16.mxu0 0
        %527 = vmatpush1.bf16.msra.mxu0 0
        %528 = vmatprep.mubr.bf16.mxu0 0
        %529 = vmatmul.mubr.bf16.gmra.mrb[0].mxu0 %v491
        %v530 = vpop.f32.mrb[0].mxu0
        %v531 = vadd.f32 0.0, %v530
        %v532 = vpop.f32.mrb[0].mxu0
        %v533 = vpop.f32.mrb[0].mxu0
        %v534 = vpop.f32.mrb[0].mxu0
        %535 = vdwg.mxu0
        %s536 = scalar_lea.vmem %s238, 8 [#allocation8]
        %537 = vst.msk [vmem:[%s536] sm:$0xff] %vm315, %v486
        %539 = vrot.lane.b32.xlu0 %v531, 8
        %v540 = vpop.permute.xlu0 %539
        %vm542 = vcmask 130112
        %543 = vst.msk [vmem:[%s231] sm:$0xff] %vm542, %v540
        %544 = vrot.lane.b32.xlu0 %v310, 112
        %v545 = vpop.permute.xlu0 %544
        %546 = vrot.lane.b32.xlu0 %v311, 80
        %v547 = vpop.permute.xlu0 %546
        %v549 = vsel %vm315, %v545, 0
        %v552 = vsel %vm315, %v547, 0
        %554 = vmatprep.subr.bf16.mxu0 0
        %555 = vmatpush1.bf16.xpose.msra.mxu0 %v552
        %556 = vmatprep.subr.bf16.mxu0 0
        %557 = vmatpush1.bf16.xpose.msra.mxu0 0
        %558 = vmatprep.subr.bf16.mxu0 0
        %559 = vmatpush1.bf16.xpose.msra.mxu0 0
        %560 = vmatprep.subr.bf16.mxu0 0
        %561 = vmatpush1.bf16.xpose.msra.mxu0 0
        %562 = vmatprep.subr.bf16.mxu0 0
        %563 = vmatpush1.bf16.xpose.msra.mxu0 0
        %564 = vmatprep.subr.bf16.mxu0 0
        %565 = vmatpush1.bf16.xpose.msra.mxu0 0
        %566 = vmatprep.subr.bf16.mxu0 0
        %567 = vmatpush1.bf16.xpose.msra.mxu0 0
        %568 = vmatprep.subr.bf16.mxu0 0
        %569 = vmatpush1.bf16.xpose.msra.mxu0 0
        %570 = vmatprep.subr.bf16.mxu0 0
        %571 = vmatpush1.bf16.xpose.msra.mxu0 0
        %572 = vmatprep.subr.bf16.mxu0 0
        %573 = vmatpush1.bf16.xpose.msra.mxu0 0
        %574 = vmatprep.subr.bf16.mxu0 0
        %575 = vmatpush1.bf16.xpose.msra.mxu0 0
        %576 = vmatprep.subr.bf16.mxu0 0
        %577 = vmatpush1.bf16.xpose.msra.mxu0 0
        %578 = vmatprep.subr.bf16.mxu0 0
        %579 = vmatpush1.bf16.xpose.msra.mxu0 0
        %580 = vmatprep.subr.bf16.mxu0 0
        %581 = vmatpush1.bf16.xpose.msra.mxu0 0
        %582 = vmatprep.subr.bf16.mxu0 0
        %583 = vmatpush1.bf16.xpose.msra.mxu0 0
        %584 = vmatprep.subr.bf16.mxu0 0
        %585 = vmatpush1.bf16.xpose.msra.mxu0 0
        %586 = vmatprep.mubr.bf16.mxu0 0
        %587 = vmatmul.mubr.bf16.gmra.mrb[0].mxu0 %v549
        %v588 = vpop.f32.mrb[0].mxu0
        %v589 = vadd.f32 0.0, %v588
        %v590 = vpop.f32.mrb[0].mxu0
        %v591 = vpop.f32.mrb[0].mxu0
        %v592 = vpop.f32.mrb[0].mxu0
        %593 = vdwg.mxu0
        %v594 = vsel %vm315, %v589, -inf
        %595 = vmax.xlane.f32.xlu0 %v594
        %v596 = vpop.xlane.xlu0 %595
        %v597 = vsub.f32 %v589, %v596
        %v598 = vmul.f32 %v597, 1.442695
        %v599 = vpow.pop %v598
        %v600 = vsel %vm315, %v599, 0.0
        %601 = vadd.xlane.f32.xlu0 %v600
        %v602 = vpop.xlane.xlu0 %601
        %v603 = vrcp.pop %v602
        %v604 = vmul.f32 %v599, %v603
        %v605 = vpack.c.bf16 %v604, %v604
        %606 = vrot.lane.b32.xlu0 %v311, 48
        %v607 = vpop.permute.xlu0 %606
        %v609 = vsel %vm315, %v605, 0
        %v612 = vsel %vm379, %v607, 0
        %614 = vmatprep.subr.bf16.mxu0 0
        %615 = vmatpush1.bf16.msra.mxu0 %v612
        %616 = vmatprep.subr.bf16.mxu0 0
        %617 = vmatpush1.bf16.msra.mxu0 0
        %618 = vmatprep.subr.bf16.mxu0 0
        %619 = vmatpush1.bf16.msra.mxu0 0
        %620 = vmatprep.subr.bf16.mxu0 0
        %621 = vmatpush1.bf16.msra.mxu0 0
        %622 = vmatprep.subr.bf16.mxu0 0
        %623 = vmatpush1.bf16.msra.mxu0 0
        %624 = vmatprep.subr.bf16.mxu0 0
        %625 = vmatpush1.bf16.msra.mxu0 0
        %626 = vmatprep.subr.bf16.mxu0 0
        %627 = vmatpush1.bf16.msra.mxu0 0
        %628 = vmatprep.subr.bf16.mxu0 0
        %629 = vmatpush1.bf16.msra.mxu0 0
        %630 = vmatprep.subr.bf16.mxu0 0
        %631 = vmatpush1.bf16.msra.mxu0 0
        %632 = vmatprep.subr.bf16.mxu0 0
        %633 = vmatpush1.bf16.msra.mxu0 0
        %634 = vmatprep.subr.bf16.mxu0 0
        %635 = vmatpush1.bf16.msra.mxu0 0
        %636 = vmatprep.subr.bf16.mxu0 0
        %637 = vmatpush1.bf16.msra.mxu0 0
        %638 = vmatprep.subr.bf16.mxu0 0
        %639 = vmatpush1.bf16.msra.mxu0 0
        %640 = vmatprep.subr.bf16.mxu0 0
        %641 = vmatpush1.bf16.msra.mxu0 0
        %642 = vmatprep.subr.bf16.mxu0 0
        %643 = vmatpush1.bf16.msra.mxu0 0
        %644 = vmatprep.subr.bf16.mxu0 0
        %645 = vmatpush1.bf16.msra.mxu0 0
        %646 = vmatprep.mubr.bf16.mxu0 0
        %647 = vmatmul.mubr.bf16.gmra.mrb[0].mxu0 %v609
        %v648 = vpop.f32.mrb[0].mxu0
        %v649 = vadd.f32 0.0, %v648
        %v650 = vpop.f32.mrb[0].mxu0
        %v651 = vpop.f32.mrb[0].mxu0
        %v652 = vpop.f32.mrb[0].mxu0
        %653 = vdwg.mxu0
        %s654 = scalar_lea.vmem %s238, 16 [#allocation8]
        %655 = vst.msk [vmem:[%s654] sm:$0xff] %vm315, %v604
        %657 = vrot.lane.b32.xlu0 %v649, 16
        %v658 = vpop.permute.xlu0 %657
        %vm660 = vcmask 195712
        %661 = vst.msk [vmem:[%s231] sm:$0xff] %vm660, %v658
        %662 = vrot.lane.b32.xlu0 %v310, 104
        %v663 = vpop.permute.xlu0 %662
        %664 = vrot.lane.b32.xlu0 %v311, 72
        %v665 = vpop.permute.xlu0 %664
        %v667 = vsel %vm315, %v663, 0
        %v670 = vsel %vm315, %v665, 0
        %672 = vmatprep.subr.bf16.mxu0 0
        %673 = vmatpush1.bf16.xpose.msra.mxu0 %v670
        %674 = vmatprep.subr.bf16.mxu0 0
        %675 = vmatpush1.bf16.xpose.msra.mxu0 0
        %676 = vmatprep.subr.bf16.mxu0 0
        %677 = vmatpush1.bf16.xpose.msra.mxu0 0
        %678 = vmatprep.subr.bf16.mxu0 0
        %679 = vmatpush1.bf16.xpose.msra.mxu0 0
        %680 = vmatprep.subr.bf16.mxu0 0
        %681 = vmatpush1.bf16.xpose.msra.mxu0 0
        %682 = vmatprep.subr.bf16.mxu0 0
        %683 = vmatpush1.bf16.xpose.msra.mxu0 0
        %684 = vmatprep.subr.bf16.mxu0 0
        %685 = vmatpush1.bf16.xpose.msra.mxu0 0
        %686 = vmatprep.subr.bf16.mxu0 0
        %687 = vmatpush1.bf16.xpose.msra.mxu0 0
        %688 = vmatprep.subr.bf16.mxu0 0
        %689 = vmatpush1.bf16.xpose.msra.mxu0 0
        %690 = vmatprep.subr.bf16.mxu0 0
        %691 = vmatpush1.bf16.xpose.msra.mxu0 0
        %692 = vmatprep.subr.bf16.mxu0 0
        %693 = vmatpush1.bf16.xpose.msra.mxu0 0
        %694 = vmatprep.subr.bf16.mxu0 0
        %695 = vmatpush1.bf16.xpose.msra.mxu0 0
        %696 = vmatprep.subr.bf16.mxu0 0
        %697 = vmatpush1.bf16.xpose.msra.mxu0 0
        %698 = vmatprep.subr.bf16.mxu0 0
        %699 = vmatpush1.bf16.xpose.msra.mxu0 0
        %700 = vmatprep.subr.bf16.mxu0 0
        %701 = vmatpush1.bf16.xpose.msra.mxu0 0
        %702 = vmatprep.subr.bf16.mxu0 0
        %703 = vmatpush1.bf16.xpose.msra.mxu0 0
        %704 = vmatprep.mubr.bf16.mxu0 0
        %705 = vmatmul.mubr.bf16.gmra.mrb[0].mxu0 %v667
        %v706 = vpop.f32.mrb[0].mxu0
        %v707 = vadd.f32 0.0, %v706
        %v708 = vpop.f32.mrb[0].mxu0
        %v709 = vpop.f32.mrb[0].mxu0
        %v710 = vpop.f32.mrb[0].mxu0
        %711 = vdwg.mxu0
        %v712 = vsel %vm315, %v707, -inf
        %713 = vmax.xlane.f32.xlu0 %v712
        %v714 = vpop.xlane.xlu0 %713
        %v715 = vsub.f32 %v707, %v714
        %v716 = vmul.f32 %v715, 1.442695
        %v717 = vpow.pop %v716
        %v718 = vsel %vm315, %v717, 0.0
        %719 = vadd.xlane.f32.xlu0 %v718
        %v720 = vpop.xlane.xlu0 %719
        %v721 = vrcp.pop %v720
        %v722 = vmul.f32 %v717, %v721
        %v723 = vpack.c.bf16 %v722, %v722
        %724 = vrot.lane.b32.xlu0 %v311, 40
        %v725 = vpop.permute.xlu0 %724
        %v727 = vsel %vm315, %v723, 0
        %v730 = vsel %vm379, %v725, 0
        %732 = vmatprep.subr.bf16.mxu0 0
        %733 = vmatpush1.bf16.msra.mxu0 %v730
        %734 = vmatprep.subr.bf16.mxu0 0
        %735 = vmatpush1.bf16.msra.mxu0 0
        %736 = vmatprep.subr.bf16.mxu0 0
        %737 = vmatpush1.bf16.msra.mxu0 0
        %738 = vmatprep.subr.bf16.mxu0 0
        %739 = vmatpush1.bf16.msra.mxu0 0
        %740 = vmatprep.subr.bf16.mxu0 0
        %741 = vmatpush1.bf16.msra.mxu0 0
        %742 = vmatprep.subr.bf16.mxu0 0
        %743 = vmatpush1.bf16.msra.mxu0 0
        %744 = vmatprep.subr.bf16.mxu0 0
        %745 = vmatpush1.bf16.msra.mxu0 0
        %746 = vmatprep.subr.bf16.mxu0 0
        %747 = vmatpush1.bf16.msra.mxu0 0
        %748 = vmatprep.subr.bf16.mxu0 0
        %749 = vmatpush1.bf16.msra.mxu0 0
        %750 = vmatprep.subr.bf16.mxu0 0
        %751 = vmatpush1.bf16.msra.mxu0 0
        %752 = vmatprep.subr.bf16.mxu0 0
        %753 = vmatpush1.bf16.msra.mxu0 0
        %754 = vmatprep.subr.bf16.mxu0 0
        %755 = vmatpush1.bf16.msra.mxu0 0
        %756 = vmatprep.subr.bf16.mxu0 0
        %757 = vmatpush1.bf16.msra.mxu0 0
        %758 = vmatprep.subr.bf16.mxu0 0
        %759 = vmatpush1.bf16.msra.mxu0 0
        %760 = vmatprep.subr.bf16.mxu0 0
        %761 = vmatpush1.bf16.msra.mxu0 0
        %762 = vmatprep.subr.bf16.mxu0 0
        %763 = vmatpush1.bf16.msra.mxu0 0
        %764 = vmatprep.mubr.bf16.mxu0 0
        %765 = vmatmul.mubr.bf16.gmra.mrb[0].mxu0 %v727
        %v766 = vpop.f32.mrb[0].mxu0
        %v767 = vadd.f32 0.0, %v766
        %v768 = vpop.f32.mrb[0].mxu0
        %v769 = vpop.f32.mrb[0].mxu0
        %v770 = vpop.f32.mrb[0].mxu0
        %771 = vdwg.mxu0
        %s772 = scalar_lea.vmem %s238, 24 [#allocation8]
        %773 = vst.msk [vmem:[%s772] sm:$0xff] %vm315, %v722
        %775 = vrot.lane.b32.xlu0 %v767, 24
        %v776 = vpop.permute.xlu0 %775
        %vm778 = vcmask 261312
        %779 = vst.msk [vmem:[%s231] sm:$0xff] %vm778, %v776
        %s780 = sand.u32 %s102, 1
        %s781 = scalar_lea.sflag [#allocation4], %s780
        %s782 = sand.u32 %s102, 1
        %s783 = smul.addr %s782, 8
        %s784 = scalar_lea.vmem [#allocation7], %s783
        %s785 = sand.u32 %s128, 1
        %s786 = scalar_lea.sflag [#allocation9], %s785
        %s787 = sand.u32 %s128, 1
        %s788 = smul.addr %s787, 32
        %s789 = scalar_lea.vmem [#allocation8], %s788
        // Predicated region
        $region41: #{tpu_custom_call.1} parent=31 // pred_check
          %p790 = pneg %p112
        $region42: #{tpu_custom_call.1} parent=31 // pred_check_branch
          %792 = sbr.rel (%p790) target = $region44
        $region43: #{tpu_custom_call.1} parent=31 // pred_region
          %s794 = ssub.s32 128, 128
          %795 = vsyncadd %s781, %s794
          %s796 = smul.addr %s26, 128
          %s797 = scalar_lea.hbm %s3, %s796
          %s799 = sshll.u32 %s784, 4
          %s800 = int_to_ptr.vmem [resolvable:$true] %s799
          %802 = dma.vmem_to_hbm [thread:$0]  %s800, 128, %s797, %s781
        $region44: #{tpu_custom_call.1} parent=31 // pred_fallthru
          _
        // Predicated region
        $region45: #{tpu_custom_call.1} parent=31 // pred_check
          %p803 = pneg %p138
        $region46: #{tpu_custom_call.1} parent=31 // pred_check_branch
          %805 = sbr.rel (%p803) target = $region48
        $region47: #{tpu_custom_call.1} parent=31 // pred_region
          %s807 = ssub.s32 512, 512
          %808 = vsyncadd %s786, %s807
          %s809 = smul.addr %s26, 4
          %s810 = smul.addr %s809, 128
          %s811 = scalar_lea.hbm %s4, %s810
          %s812 = sshll.u32 %s789, 4
          %s813 = int_to_ptr.vmem [resolvable:$true] %s812
          %818 = dma.vmem_to_hbm [thread:$0]  %s813, 512, %s811, %s786, 128, 128, 8
        $region48: #{tpu_custom_call.1} parent=31 // pred_fallthru
          _
      $region32: #{tpu_custom_call.1} parent=5 // pred_fallthru
        _
      %p819 = scmp.le.s32.totalorder 2, %s21
      // Predicated region
      $region49: #{tpu_custom_call.1} parent=5 // pred_check
        %p820 = pneg %p819
      $region50: #{tpu_custom_call.1} parent=5 // pred_check_branch
        %822 = sbr.rel (%p820) target = $region52
      $region51: #{tpu_custom_call.1} parent=5 // pred_region
        %s823 = ssub.s32 %s21, 2
        // Predicated region
        $region53: #{tpu_custom_call.1} parent=51 // pred_check
          %p824 = pneg %p118
        $region54: #{tpu_custom_call.1} parent=51 // pred_check_branch
          %826 = sbr.rel (%p824) target = $region56
        $region55: #{tpu_custom_call.1} parent=51 // pred_region
          %s827 = sand.u32 %s103, 1
          %s828 = scalar_lea.sflag [#allocation4], %s827
          %s829 = sand.u32 %s103, 1
          %s830 = smul.addr %s829, 8
          %s831 = scalar_lea.vmem [#allocation7], %s830
          %832 = dma.done %s828, 128
        $region56: #{tpu_custom_call.1} parent=51 // pred_fallthru
          _
        // Predicated region
        $region57: #{tpu_custom_call.1} parent=51 // pred_check
          %p833 = pneg %p144
        $region58: #{tpu_custom_call.1} parent=51 // pred_check_branch
          %835 = sbr.rel (%p833) target = $region60
        $region59: #{tpu_custom_call.1} parent=51 // pred_region
          %s836 = sand.u32 %s129, 1
          %s837 = scalar_lea.sflag [#allocation9], %s836
          %s838 = sand.u32 %s129, 1
          %s839 = smul.addr %s838, 32
          %s840 = scalar_lea.vmem [#allocation8], %s839
          %841 = dma.done %s837, 512
        $region60: #{tpu_custom_call.1} parent=51 // pred_fallthru
          _
      $region52: #{tpu_custom_call.1} parent=5 // pred_fallthru
        _
    $region6: #{tpu_custom_call.1} parent=1 // loop_footer
      %s25 = sadd.s32 1, %s21
    $region7: #{tpu_custom_call.1} parent=1 // loop_footer_branch
      %20 = sbr.rel target = $region3
    $region8: #{tpu_custom_call.1} parent=1 // loop_exit
      _
    %842 = vsyncpa [#allocation3], 1
    %s843 = scalar_lea.sflag [#allocation3], 1
    %844 = vsyncpa %s843, 1
    %845 = vsyncpa [#allocation6], 1
    %846 = vsyncpa [#allocation4], 1
    %s847 = scalar_lea.sflag [#allocation4], 1
    %848 = vsyncpa %s847, 1
    %849 = vsyncpa [#allocation9], 1
    %s850 = scalar_lea.sflag [#allocation9], 1
    %851 = vsyncpa %s850, 1

</llo_original>
